<compile_context>
chip_gen: v6e
topology: v6e:2x2x1
jax: 0.10.0
libtpu: 0.0.40
codegen_flags: <defaults>
</compile_context>

<pallas_src>
import functools

import numpy as np
import jax
import jax.numpy as jnp
from jax.experimental import pallas as pl
from jax.experimental.pallas import tpu as pltpu


# ----------------------------- fused Pallas kernel ---------------------------------


def _fused_tcn_kernel(*refs, ksize, dilations, has_ds):
    """Whole TCN + Linear for one batch tile.

    refs = (x,
            [w1x, b1x, w2, b2] per level,
            lin_w, lin_b,
            out)
      x    : (Bt, T, C0)
      w1x  : (k*Cin, Cout) bf16, or (k*Cin, 2*Cout) bf16 when the level has a 1x1
             downsample fused in as extra output columns
      b1x  : (1, Cout) or (1, 2*Cout) f32 (conv1 bias [, downsample bias])
      w2   : (k*Cout, Cout) bf16
      b2   : (1, Cout) f32
      lin_w: (C_last, out_pad) bf16 (zero-padded to a 128-lane multiple)
      lin_b: (1, out_pad) f32
      out  : (Bt, T, out_pad)
    """
    n_levels = len(dilations)
    it = iter(refs)
    x_ref = next(it)
    levels = [(next(it), next(it), next(it), next(it)) for _ in range(n_levels)]
    lw_ref = next(it)
    lb_ref = next(it)
    o_ref = next(it)

    Bt, T, _ = x_ref.shape

    def shift3(a, s):
        # Causal shift forward in time by s along axis=1 (zero-fill); per batch
        # element by construction (no cross-batch leakage, no mask needed).
        if s == 0:
            return a
        bt, t, c = a.shape
        if s >= t:               # clamp: whole window falls off the front
            return jnp.zeros_like(a)
        return jnp.concatenate(
            [jnp.zeros((bt, s, c), a.dtype), a[:, : t - s, :]], axis=1)

    def mxu(a2d, w_ref):
        # bf16 MXU inputs (weights pre-cast in the wrapper), f32 accumulation.
        return jnp.dot(a2d.astype(jnp.bfloat16), w_ref[...],
                       preferred_element_type=jnp.float32)

    h3 = x_ref[...].astype(jnp.float32)          # (Bt, T, C) f32 activations

    for (w1x, b1x, w2, b2), d, ds in zip(levels, dilations, has_ds):
        cin = h3.shape[-1]
        cout = w2.shape[-1]

        # conv1 + chomp (+ fused 1x1 downsample): all k taps folded into one matmul.
        a1 = jnp.concatenate([shift3(h3, (ksize - 1 - j) * d) for j in range(ksize)],
                             axis=-1).reshape(Bt * T, ksize * cin)
        pre1 = mxu(a1, w1x) + b1x[...]           # (Bt*T, Cout or 2*Cout), f32 epilogue
        if ds:
            y1 = jnp.maximum(pre1[:, :cout], 0.0)     # conv1 + ReLU (+dropout p=0)
            res = pre1[:, cout:]                       # 1x1 downsample (bias included)
        else:
            y1 = jnp.maximum(pre1, 0.0)
            res = h3.reshape(Bt * T, cin)              # identity residual (Cin == Cout)

        # conv2 + chomp + ReLU
        y1_3 = y1.reshape(Bt, T, cout)
        a2 = jnp.concatenate([shift3(y1_3, (ksize - 1 - j) * d) for j in range(ksize)],
                             axis=-1).reshape(Bt * T, ksize * cout)
        y2 = jnp.maximum(mxu(a2, w2) + b2[...], 0.0)

        # residual + final ReLU
        h3 = jnp.maximum(y2 + res, 0.0).reshape(Bt, T, cout)

    out = mxu(h3.reshape(Bt * T, h3.shape[-1]), lw_ref) + lb_ref[...]   # final Linear
    o_ref[...] = out.reshape(o_ref.shape).astype(o_ref.dtype)           # lane-dense store


# ----------------------------- wrapper ---------------------------------------------


def mimic3_tcn_target_forward(x, params, kernel_size):
    """x: (B, T, D) exactly as handed to the PyTorch forward (before its transpose)."""
    B, T, D = x.shape
    blocks = params["blocks"]
    out_dim = params["lin_w"].shape[-1]
    dilations = tuple(int(blk["dilation"]) for blk in blocks)
    has_ds = tuple("wd" in blk for blk in blocks)

    # Split the batch across TensorCores only when each tile has enough rows to
    # amortize the ~600-cycle per-grid-step overhead; single-TC chips and the demo
    # shapes run exactly one step.  Tiles are whole batch elements, so causal shifts
    # never cross a tile boundary.
    nbt = 2 if (B % 2 == 0 and (B // 2) * T >= 4096) else 1
    Bt = B // nbt
    # TODO(synk): for production B*T / channel widths add a finer T-aligned rows tile
    # sized to ~half of v7x's 64 MiB VMEM and set vmem_limit_bytes explicitly.

    out_pad = ((out_dim + 127) // 128) * 128   # lane-dense (unmasked) output store

    args = [x]
    in_specs = [pl.BlockSpec((Bt, T, D), lambda i: (i, 0, 0))]

    flops = 0
    cin = D
    for blk in blocks:
        k, cin_b, cout = blk["w1"].shape
        w1c = blk["w1"].reshape(k * cin_b, cout)     # tap-major concat matches kernel
        if "wd" in blk:
            # Fuse the 1x1 downsample into conv1: extra output columns, non-zero only
            # in the zero-shift (last) tap's row block.
            ext = jnp.zeros((k * cin_b, cout), jnp.float32)
            ext = ext.at[(k - 1) * cin_b:, :].set(blk["wd"])
            w1x = jnp.concatenate([w1c, ext], axis=1)            # (k*Cin, 2*Cout)
            b1x = jnp.concatenate([blk["b1"], blk["bd"]], axis=1)
        else:
            w1x, b1x = w1c, blk["b1"]
        w2c = blk["w2"].reshape(k * cout, cout)

        level_args = [w1x.astype(jnp.bfloat16), b1x,             # weights pre-cast bf16
                      w2c.astype(jnp.bfloat16), blk["b2"]]
        for a in level_args:
            args.append(a)
            in_specs.append(pl.BlockSpec(a.shape, lambda i: (0, 0)))

        flops += 2 * B * T * (k * cin_b) * w1x.shape[1]
        flops += 2 * B * T * (k * cout) * cout
        cin = cout

    lw = jnp.zeros((cin, out_pad), jnp.float32).at[:, :out_dim].set(params["lin_w"])
    lb = jnp.zeros((1, out_pad), jnp.float32).at[:, :out_dim].set(params["lin_b"])
    args += [lw.astype(jnp.bfloat16), lb]
    in_specs += [pl.BlockSpec((cin, out_pad), lambda i: (0, 0)),
                 pl.BlockSpec((1, out_pad), lambda i: (0, 0))]
    flops += 2 * B * T * cin * out_pad

    bytes_accessed = int(sum(int(a.size) * a.dtype.itemsize for a in args)
                         + B * T * out_pad * x.dtype.itemsize)

    kern = functools.partial(_fused_tcn_kernel, ksize=kernel_size,
                             dilations=dilations, has_ds=has_ds)

    out3 = pl.pallas_call(
        kern,
        out_shape=jax.ShapeDtypeStruct((B, T, out_pad), x.dtype),
        grid=(nbt,),
        in_specs=in_specs,
        out_specs=pl.BlockSpec((Bt, T, out_pad), lambda i: (i, 0, 0)),
        compiler_params=pltpu.CompilerParams(dimension_semantics=("parallel",)),
        cost_estimate=pl.CostEstimate(flops=int(flops), transcendentals=0,
                                      bytes_accessed=bytes_accessed),
    )(*args)
    return out3[:, :, :out_dim]


# ----------------------------- parameters ------------------------------------------


def init_params(key, input_dim, input_seq_len, output_channels, output_dim, kernel_size):
    """Deterministic synthetic parameters (shapes mirror the PyTorch module)."""
    del input_seq_len  # shifts are done by slicing, not matrices
    params = {"blocks": []}
    cin = input_dim
    for i, cout in enumerate(output_channels):
        key, k1, k2, k3, k4, k5, k6 = jax.random.split(key, 7)
        blk = {
            "dilation": 2 ** i,
            # conv weights stored as taps (k, Cin, Cout) == transpose of torch (Cout, Cin, k)
            "w1": jax.random.normal(k1, (kernel_size, cin, cout), jnp.float32) * 0.1,
            "b1": jax.random.normal(k2, (1, cout), jnp.float32) * 0.1,
            "w2": jax.random.normal(k3, (kernel_size, cout, cout), jnp.float32) * 0.1,
            "b2": jax.random.normal(k4, (1, cout), jnp.float32) * 0.1,
        }
        if cin != cout:
            blk["wd"] = jax.random.normal(k5, (cin, cout), jnp.float32) * 0.1
            blk["bd"] = jax.random.normal(k6, (1, cout), jnp.float32) * 0.1
        params["blocks"].append(blk)
        cin = cout
    key, k1, k2 = jax.random.split(key, 3)
    params["lin_w"] = jax.random.normal(k1, (cin, output_dim), jnp.float32) * 0.1
    params["lin_b"] = jax.random.normal(k2, (1, output_dim), jnp.float32) * 0.1
    return params


# ----------------------------- pure-JAX reference -----------------------------------


def _ref_forward(x, params, ksize):
    """Same math as the kernel (bf16 MXU inputs, f32 accumulation / epilogue)."""
    def bdot(a, w):
        return jnp.einsum("btc,cd->btd", a.astype(jnp.bfloat16), w.astype(jnp.bfloat16),
                          preferred_element_type=jnp.float32)

    def causal_shift(a, s):  # a: (B, T, C)
        if s == 0:
            return a
        if s >= a.shape[1]:
            return jnp.zeros_like(a)
        return jnp.concatenate([jnp.zeros_like(a[:, :s]), a[:, :-s]], axis=1)

    h = x.astype(jnp.float32)
    for blk in params["blocks"]:
        d = int(blk["dilation"])
        y = sum(bdot(causal_shift(h, (ksize - 1 - j) * d), blk["w1"][j]) for j in range(ksize))
        y = jax.nn.relu(y + blk["b1"][None])
        y2 = sum(bdot(causal_shift(y, (ksize - 1 - j) * d), blk["w2"][j]) for j in range(ksize))
        y2 = jax.nn.relu(y2 + blk["b2"][None])
        res = (bdot(h, blk["wd"]) + blk["bd"][None]) if "wd" in blk else h
        h = jax.nn.relu(y2 + res)
    return bdot(h, params["lin_w"]) + params["lin_b"][None]


# ----------------------------------- main -------------------------------------------


if __name__ == "__main__":
    # Small shapes: batch=2, seq=16, input_dim=8, channels [16,16,16], output_dim=16, k=2
    B, T, D = 2, 16, 8
    output_channels = [16, 16, 16]
    output_dim = 16
    kernel_size = 2

    key = jax.random.PRNGKey(0)
    key, xk = jax.random.split(key)
    x = jax.random.normal(xk, (B, T, D), jnp.float32)

    params = init_params(key, D, T, output_channels, output_dim, kernel_size)

    out = mimic3_tcn_target_forward(x, params, kernel_size)
    out = jax.block_until_ready(out)
    assert out.shape == (B, T, output_dim), out.shape

    ref = _ref_forward(x, params, kernel_size)
    # Both paths round the same f32 operands to bf16 and accumulate in f32; tolerance
    # only absorbs accumulation-order / bf16 rounding-boundary differences.
    np.testing.assert_allclose(np.asarray(out), np.asarray(ref), atol=1e-2, rtol=1e-2)

    print("KERNEL_OK")
</pallas_src>

<mosaic_0001>
module attributes {stable_mosaic.version = 11 : i64} {
  func.func @_fused_tcn_kernel(%arg0: i32, %arg1: memref<2x16x8xf32, #tpu.memory_space<vmem>>, %arg2: memref<16x32xbf16, #tpu.memory_space<vmem>>, %arg3: memref<1x32xf32, #tpu.memory_space<vmem>>, %arg4: memref<32x16xbf16, #tpu.memory_space<vmem>>, %arg5: memref<1x16xf32, #tpu.memory_space<vmem>>, %arg6: memref<32x16xbf16, #tpu.memory_space<vmem>>, %arg7: memref<1x16xf32, #tpu.memory_space<vmem>>, %arg8: memref<32x16xbf16, #tpu.memory_space<vmem>>, %arg9: memref<1x16xf32, #tpu.memory_space<vmem>>, %arg10: memref<32x16xbf16, #tpu.memory_space<vmem>>, %arg11: memref<1x16xf32, #tpu.memory_space<vmem>>, %arg12: memref<32x16xbf16, #tpu.memory_space<vmem>>, %arg13: memref<1x16xf32, #tpu.memory_space<vmem>>, %arg14: memref<16x128xbf16, #tpu.memory_space<vmem>>, %arg15: memref<1x128xf32, #tpu.memory_space<vmem>>, %arg16: memref<2x16x128xf32, #tpu.memory_space<vmem>>) attributes {dimension_semantics = [#tpu.dimension_semantics<parallel>], iteration_bounds = array<i64: 1>, scalar_prefetch = 0 : i64, scratch_operands = 0 : i64, tpu.core_type = #tpu.core_type<tc>, window_params = [{transform_indices = @transform_0, window_bounds = array<i64: 2, 16, 8>}, {pipeline_mode = #tpu.pipeline_mode<synchronous>, transform_indices = @transform_1, window_bounds = array<i64: 16, 32>}, {pipeline_mode = #tpu.pipeline_mode<synchronous>, transform_indices = @transform_2, window_bounds = array<i64: 1, 32>}, {pipeline_mode = #tpu.pipeline_mode<synchronous>, transform_indices = @transform_3, window_bounds = array<i64: 32, 16>}, {pipeline_mode = #tpu.pipeline_mode<synchronous>, transform_indices = @transform_4, window_bounds = array<i64: 1, 16>}, {pipeline_mode = #tpu.pipeline_mode<synchronous>, transform_indices = @transform_5, window_bounds = array<i64: 32, 16>}, {pipeline_mode = #tpu.pipeline_mode<synchronous>, transform_indices = @transform_6, window_bounds = array<i64: 1, 16>}, {pipeline_mode = #tpu.pipeline_mode<synchronous>, transform_indices = @transform_7, window_bounds = array<i64: 32, 16>}, {pipeline_mode = #tpu.pipeline_mode<synchronous>, transform_indices = @transform_8, window_bounds = array<i64: 1, 16>}, {pipeline_mode = #tpu.pipeline_mode<synchronous>, transform_indices = @transform_9, window_bounds = array<i64: 32, 16>}, {pipeline_mode = #tpu.pipeline_mode<synchronous>, transform_indices = @transform_10, window_bounds = array<i64: 1, 16>}, {pipeline_mode = #tpu.pipeline_mode<synchronous>, transform_indices = @transform_11, window_bounds = array<i64: 32, 16>}, {pipeline_mode = #tpu.pipeline_mode<synchronous>, transform_indices = @transform_12, window_bounds = array<i64: 1, 16>}, {pipeline_mode = #tpu.pipeline_mode<synchronous>, transform_indices = @transform_13, window_bounds = array<i64: 16, 128>}, {pipeline_mode = #tpu.pipeline_mode<synchronous>, transform_indices = @transform_14, window_bounds = array<i64: 1, 128>}, {transform_indices = @transform_15, window_bounds = array<i64: 2, 16, 128>}]} {
    %c0 = arith.constant 0 : index
    %c0_0 = arith.constant 0 : index
    %c0_1 = arith.constant 0 : index
    %0 = vector.load %arg1[%c0, %c0_0, %c0_1] : memref<2x16x8xf32, #tpu.memory_space<vmem>>, vector<2x16x8xf32>
    %cst = arith.constant 0.000000e+00 : f32
    %1 = vector.broadcast %cst : f32 to vector<2x1x8xf32>
    %2 = vector.extract_strided_slice %0 {offsets = [0, 0, 0], sizes = [2, 15, 8], strides = [1, 1, 1]} : vector<2x16x8xf32> to vector<2x15x8xf32>
    %3 = tpu.concatenate %1, %2 in 1 : vector<2x1x8xf32>, vector<2x15x8xf32> -> vector<2x16x8xf32>
    %4 = tpu.concatenate %3, %0 in 2 : vector<2x16x8xf32>, vector<2x16x8xf32> -> vector<2x16x16xf32>
    %5 = vector.shape_cast %4 : vector<2x16x16xf32> to vector<32x16xf32>
    %6 = arith.truncf %5 : vector<32x16xf32> to vector<32x16xbf16>
    %c0_2 = arith.constant 0 : index
    %c0_3 = arith.constant 0 : index
    %7 = vector.load %arg2[%c0_2, %c0_3] : memref<16x32xbf16, #tpu.memory_space<vmem>>, vector<16x32xbf16>
    %cst_4 = arith.constant dense<0.000000e+00> : vector<32x32xf32>
    %8 = tpu.matmul %6, %7, %cst_4 {dimension_numbers = #tpu.dot_dimension_numbers<[1], [0], [0], [1], [0, 0, 1, 1], [], []>} : vector<32x16xbf16>, vector<16x32xbf16>, vector<32x32xf32> -> vector<32x32xf32>
    %c0_5 = arith.constant 0 : index
    %c0_6 = arith.constant 0 : index
    %9 = vector.load %arg3[%c0_5, %c0_6] : memref<1x32xf32, #tpu.memory_space<vmem>>, vector<1x32xf32>
    %10 = vector.broadcast %9 : vector<1x32xf32> to vector<32x32xf32>
    %11 = arith.addf %8, %10 : vector<32x32xf32>
    %12 = vector.extract_strided_slice %11 {offsets = [0, 0], sizes = [32, 16], strides = [1, 1]} : vector<32x32xf32> to vector<32x16xf32>
    %cst_7 = arith.constant 0.000000e+00 : f32
    %13 = vector.broadcast %cst_7 : f32 to vector<32x16xf32>
    %14 = arith.maximumf %12, %13 : vector<32x16xf32>
    %15 = vector.extract_strided_slice %11 {offsets = [0, 16], sizes = [32, 16], strides = [1, 1]} : vector<32x32xf32> to vector<32x16xf32>
    %16 = vector.shape_cast %14 : vector<32x16xf32> to vector<2x16x16xf32>
    %cst_8 = arith.constant 0.000000e+00 : f32
    %17 = vector.broadcast %cst_8 : f32 to vector<2x1x16xf32>
    %18 = vector.extract_strided_slice %16 {offsets = [0, 0, 0], sizes = [2, 15, 16], strides = [1, 1, 1]} : vector<2x16x16xf32> to vector<2x15x16xf32>
    %19 = tpu.concatenate %17, %18 in 1 : vector<2x1x16xf32>, vector<2x15x16xf32> -> vector<2x16x16xf32>
    %20 = tpu.concatenate %19, %16 in 2 : vector<2x16x16xf32>, vector<2x16x16xf32> -> vector<2x16x32xf32>
    %21 = vector.shape_cast %20 : vector<2x16x32xf32> to vector<32x32xf32>
    %22 = arith.truncf %21 : vector<32x32xf32> to vector<32x32xbf16>
    %c0_9 = arith.constant 0 : index
    %c0_10 = arith.constant 0 : index
    %23 = vector.load %arg4[%c0_9, %c0_10] : memref<32x16xbf16, #tpu.memory_space<vmem>>, vector<32x16xbf16>
    %cst_11 = arith.constant dense<0.000000e+00> : vector<32x16xf32>
    %24 = tpu.matmul %22, %23, %cst_11 {dimension_numbers = #tpu.dot_dimension_numbers<[1], [0], [0], [1], [0, 0, 1, 1], [], []>} : vector<32x32xbf16>, vector<32x16xbf16>, vector<32x16xf32> -> vector<32x16xf32>
    %c0_12 = arith.constant 0 : index
    %c0_13 = arith.constant 0 : index
    %25 = vector.load %arg5[%c0_12, %c0_13] : memref<1x16xf32, #tpu.memory_space<vmem>>, vector<1x16xf32>
    %26 = vector.broadcast %25 : vector<1x16xf32> to vector<32x16xf32>
    %27 = arith.addf %24, %26 : vector<32x16xf32>
    %cst_14 = arith.constant 0.000000e+00 : f32
    %28 = vector.broadcast %cst_14 : f32 to vector<32x16xf32>
    %29 = arith.maximumf %27, %28 : vector<32x16xf32>
    %30 = arith.addf %29, %15 : vector<32x16xf32>
    %cst_15 = arith.constant 0.000000e+00 : f32
    %31 = vector.broadcast %cst_15 : f32 to vector<32x16xf32>
    %32 = arith.maximumf %30, %31 : vector<32x16xf32>
    %33 = vector.shape_cast %32 : vector<32x16xf32> to vector<2x16x16xf32>
    %cst_16 = arith.constant 0.000000e+00 : f32
    %34 = vector.broadcast %cst_16 : f32 to vector<2x2x16xf32>
    %35 = vector.extract_strided_slice %33 {offsets = [0, 0, 0], sizes = [2, 14, 16], strides = [1, 1, 1]} : vector<2x16x16xf32> to vector<2x14x16xf32>
    %36 = tpu.concatenate %34, %35 in 1 : vector<2x2x16xf32>, vector<2x14x16xf32> -> vector<2x16x16xf32>
    %37 = tpu.concatenate %36, %33 in 2 : vector<2x16x16xf32>, vector<2x16x16xf32> -> vector<2x16x32xf32>
    %38 = vector.shape_cast %37 : vector<2x16x32xf32> to vector<32x32xf32>
    %39 = arith.truncf %38 : vector<32x32xf32> to vector<32x32xbf16>
    %c0_17 = arith.constant 0 : index
    %c0_18 = arith.constant 0 : index
    %40 = vector.load %arg6[%c0_17, %c0_18] : memref<32x16xbf16, #tpu.memory_space<vmem>>, vector<32x16xbf16>
    %cst_19 = arith.constant dense<0.000000e+00> : vector<32x16xf32>
    %41 = tpu.matmul %39, %40, %cst_19 {dimension_numbers = #tpu.dot_dimension_numbers<[1], [0], [0], [1], [0, 0, 1, 1], [], []>} : vector<32x32xbf16>, vector<32x16xbf16>, vector<32x16xf32> -> vector<32x16xf32>
    %c0_20 = arith.constant 0 : index
    %c0_21 = arith.constant 0 : index
    %42 = vector.load %arg7[%c0_20, %c0_21] : memref<1x16xf32, #tpu.memory_space<vmem>>, vector<1x16xf32>
    %43 = vector.broadcast %42 : vector<1x16xf32> to vector<32x16xf32>
    %44 = arith.addf %41, %43 : vector<32x16xf32>
    %cst_22 = arith.constant 0.000000e+00 : f32
    %45 = vector.broadcast %cst_22 : f32 to vector<32x16xf32>
    %46 = arith.maximumf %44, %45 : vector<32x16xf32>
    %47 = vector.shape_cast %33 : vector<2x16x16xf32> to vector<32x16xf32>
    %48 = vector.shape_cast %46 : vector<32x16xf32> to vector<2x16x16xf32>
    %cst_23 = arith.constant 0.000000e+00 : f32
    %49 = vector.broadcast %cst_23 : f32 to vector<2x2x16xf32>
    %50 = vector.extract_strided_slice %48 {offsets = [0, 0, 0], sizes = [2, 14, 16], strides = [1, 1, 1]} : vector<2x16x16xf32> to vector<2x14x16xf32>
    %51 = tpu.concatenate %49, %50 in 1 : vector<2x2x16xf32>, vector<2x14x16xf32> -> vector<2x16x16xf32>
    %52 = tpu.concatenate %51, %48 in 2 : vector<2x16x16xf32>, vector<2x16x16xf32> -> vector<2x16x32xf32>
    %53 = vector.shape_cast %52 : vector<2x16x32xf32> to vector<32x32xf32>
    %54 = arith.truncf %53 : vector<32x32xf32> to vector<32x32xbf16>
    %c0_24 = arith.constant 0 : index
    %c0_25 = arith.constant 0 : index
    %55 = vector.load %arg8[%c0_24, %c0_25] : memref<32x16xbf16, #tpu.memory_space<vmem>>, vector<32x16xbf16>
    %cst_26 = arith.constant dense<0.000000e+00> : vector<32x16xf32>
    %56 = tpu.matmul %54, %55, %cst_26 {dimension_numbers = #tpu.dot_dimension_numbers<[1], [0], [0], [1], [0, 0, 1, 1], [], []>} : vector<32x32xbf16>, vector<32x16xbf16>, vector<32x16xf32> -> vector<32x16xf32>
    %c0_27 = arith.constant 0 : index
    %c0_28 = arith.constant 0 : index
    %57 = vector.load %arg9[%c0_27, %c0_28] : memref<1x16xf32, #tpu.memory_space<vmem>>, vector<1x16xf32>
    %58 = vector.broadcast %57 : vector<1x16xf32> to vector<32x16xf32>
    %59 = arith.addf %56, %58 : vector<32x16xf32>
    %cst_29 = arith.constant 0.000000e+00 : f32
    %60 = vector.broadcast %cst_29 : f32 to vector<32x16xf32>
    %61 = arith.maximumf %59, %60 : vector<32x16xf32>
    %62 = arith.addf %61, %47 : vector<32x16xf32>
    %cst_30 = arith.constant 0.000000e+00 : f32
    %63 = vector.broadcast %cst_30 : f32 to vector<32x16xf32>
    %64 = arith.maximumf %62, %63 : vector<32x16xf32>
    %65 = vector.shape_cast %64 : vector<32x16xf32> to vector<2x16x16xf32>
    %cst_31 = arith.constant 0.000000e+00 : f32
    %66 = vector.broadcast %cst_31 : f32 to vector<2x4x16xf32>
    %67 = vector.extract_strided_slice %65 {offsets = [0, 0, 0], sizes = [2, 12, 16], strides = [1, 1, 1]} : vector<2x16x16xf32> to vector<2x12x16xf32>
    %68 = tpu.concatenate %66, %67 in 1 : vector<2x4x16xf32>, vector<2x12x16xf32> -> vector<2x16x16xf32>
    %69 = tpu.concatenate %68, %65 in 2 : vector<2x16x16xf32>, vector<2x16x16xf32> -> vector<2x16x32xf32>
    %70 = vector.shape_cast %69 : vector<2x16x32xf32> to vector<32x32xf32>
    %71 = arith.truncf %70 : vector<32x32xf32> to vector<32x32xbf16>
    %c0_32 = arith.constant 0 : index
    %c0_33 = arith.constant 0 : index
    %72 = vector.load %arg10[%c0_32, %c0_33] : memref<32x16xbf16, #tpu.memory_space<vmem>>, vector<32x16xbf16>
    %cst_34 = arith.constant dense<0.000000e+00> : vector<32x16xf32>
    %73 = tpu.matmul %71, %72, %cst_34 {dimension_numbers = #tpu.dot_dimension_numbers<[1], [0], [0], [1], [0, 0, 1, 1], [], []>} : vector<32x32xbf16>, vector<32x16xbf16>, vector<32x16xf32> -> vector<32x16xf32>
    %c0_35 = arith.constant 0 : index
    %c0_36 = arith.constant 0 : index
    %74 = vector.load %arg11[%c0_35, %c0_36] : memref<1x16xf32, #tpu.memory_space<vmem>>, vector<1x16xf32>
    %75 = vector.broadcast %74 : vector<1x16xf32> to vector<32x16xf32>
    %76 = arith.addf %73, %75 : vector<32x16xf32>
    %cst_37 = arith.constant 0.000000e+00 : f32
    %77 = vector.broadcast %cst_37 : f32 to vector<32x16xf32>
    %78 = arith.maximumf %76, %77 : vector<32x16xf32>
    %79 = vector.shape_cast %65 : vector<2x16x16xf32> to vector<32x16xf32>
    %80 = vector.shape_cast %78 : vector<32x16xf32> to vector<2x16x16xf32>
    %cst_38 = arith.constant 0.000000e+00 : f32
    %81 = vector.broadcast %cst_38 : f32 to vector<2x4x16xf32>
    %82 = vector.extract_strided_slice %80 {offsets = [0, 0, 0], sizes = [2, 12, 16], strides = [1, 1, 1]} : vector<2x16x16xf32> to vector<2x12x16xf32>
    %83 = tpu.concatenate %81, %82 in 1 : vector<2x4x16xf32>, vector<2x12x16xf32> -> vector<2x16x16xf32>
    %84 = tpu.concatenate %83, %80 in 2 : vector<2x16x16xf32>, vector<2x16x16xf32> -> vector<2x16x32xf32>
    %85 = vector.shape_cast %84 : vector<2x16x32xf32> to vector<32x32xf32>
    %86 = arith.truncf %85 : vector<32x32xf32> to vector<32x32xbf16>
    %c0_39 = arith.constant 0 : index
    %c0_40 = arith.constant 0 : index
    %87 = vector.load %arg12[%c0_39, %c0_40] : memref<32x16xbf16, #tpu.memory_space<vmem>>, vector<32x16xbf16>
    %cst_41 = arith.constant dense<0.000000e+00> : vector<32x16xf32>
    %88 = tpu.matmul %86, %87, %cst_41 {dimension_numbers = #tpu.dot_dimension_numbers<[1], [0], [0], [1], [0, 0, 1, 1], [], []>} : vector<32x32xbf16>, vector<32x16xbf16>, vector<32x16xf32> -> vector<32x16xf32>
    %c0_42 = arith.constant 0 : index
    %c0_43 = arith.constant 0 : index
    %89 = vector.load %arg13[%c0_42, %c0_43] : memref<1x16xf32, #tpu.memory_space<vmem>>, vector<1x16xf32>
    %90 = vector.broadcast %89 : vector<1x16xf32> to vector<32x16xf32>
    %91 = arith.addf %88, %90 : vector<32x16xf32>
    %cst_44 = arith.constant 0.000000e+00 : f32
    %92 = vector.broadcast %cst_44 : f32 to vector<32x16xf32>
    %93 = arith.maximumf %91, %92 : vector<32x16xf32>
    %94 = arith.addf %93, %79 : vector<32x16xf32>
    %cst_45 = arith.constant 0.000000e+00 : f32
    %95 = vector.broadcast %cst_45 : f32 to vector<32x16xf32>
    %96 = arith.maximumf %94, %95 : vector<32x16xf32>
    %97 = vector.shape_cast %96 : vector<32x16xf32> to vector<2x16x16xf32>
    %98 = vector.shape_cast %97 : vector<2x16x16xf32> to vector<32x16xf32>
    %99 = arith.truncf %98 : vector<32x16xf32> to vector<32x16xbf16>
    %c0_46 = arith.constant 0 : index
    %c0_47 = arith.constant 0 : index
    %100 = vector.load %arg14[%c0_46, %c0_47] : memref<16x128xbf16, #tpu.memory_space<vmem>>, vector<16x128xbf16>
    %cst_48 = arith.constant dense<0.000000e+00> : vector<32x128xf32>
    %101 = tpu.matmul %99, %100, %cst_48 {dimension_numbers = #tpu.dot_dimension_numbers<[1], [0], [0], [1], [0, 0, 1, 1], [], []>} : vector<32x16xbf16>, vector<16x128xbf16>, vector<32x128xf32> -> vector<32x128xf32>
    %c0_49 = arith.constant 0 : index
    %c0_50 = arith.constant 0 : index
    %102 = vector.load %arg15[%c0_49, %c0_50] : memref<1x128xf32, #tpu.memory_space<vmem>>, vector<1x128xf32>
    %103 = vector.broadcast %102 : vector<1x128xf32> to vector<32x128xf32>
    %104 = arith.addf %101, %103 : vector<32x128xf32>
    %105 = vector.shape_cast %104 : vector<32x128xf32> to vector<2x16x128xf32>
    %c0_51 = arith.constant 0 : index
    %c0_52 = arith.constant 0 : index
    %c0_53 = arith.constant 0 : index
    %106 = vector.load %arg16[%c0_51, %c0_52, %c0_53] : memref<2x16x128xf32, #tpu.memory_space<vmem>>, vector<2x16x128xf32>
    tpu.vector_store %arg16[%c0_51, %c0_52, %c0_53], %105 {strides = array<i32>} : memref<2x16x128xf32, #tpu.memory_space<vmem>>, vector<2x16x128xf32>,
    return
  }
  func.func @transform_0(%arg0: i32) -> (i32, i32, i32) {
    %c0_i32 = arith.constant 0 : i32
    %c0_i32_0 = arith.constant 0 : i32
    %c0_i32_1 = arith.constant 0 : i32
    return %arg0, %c0_i32, %c0_i32_0 : i32, i32, i32
  }
  func.func @transform_1(%arg0: i32) -> (i32, i32) {
    %c0_i32 = arith.constant 0 : i32
    %c0_i32_0 = arith.constant 0 : i32
    %c0_i32_1 = arith.constant 0 : i32
    return %c0_i32, %c0_i32_0 : i32, i32
  }
  func.func @transform_2(%arg0: i32) -> (i32, i32) {
    %c0_i32 = arith.constant 0 : i32
    %c0_i32_0 = arith.constant 0 : i32
    %c0_i32_1 = arith.constant 0 : i32
    return %c0_i32, %c0_i32_0 : i32, i32
  }
  func.func @transform_3(%arg0: i32) -> (i32, i32) {
    %c0_i32 = arith.constant 0 : i32
    %c0_i32_0 = arith.constant 0 : i32
    %c0_i32_1 = arith.constant 0 : i32
    return %c0_i32, %c0_i32_0 : i32, i32
  }
  func.func @transform_4(%arg0: i32) -> (i32, i32) {
    %c0_i32 = arith.constant 0 : i32
    %c0_i32_0 = arith.constant 0 : i32
    %c0_i32_1 = arith.constant 0 : i32
    return %c0_i32, %c0_i32_0 : i32, i32
  }
  func.func @transform_5(%arg0: i32) -> (i32, i32) {
    %c0_i32 = arith.constant 0 : i32
    %c0_i32_0 = arith.constant 0 : i32
    %c0_i32_1 = arith.constant 0 : i32
    return %c0_i32, %c0_i32_0 : i32, i32
  }
  func.func @transform_6(%arg0: i32) -> (i32, i32) {
    %c0_i32 = arith.constant 0 : i32
    %c0_i32_0 = arith.constant 0 : i32
    %c0_i32_1 = arith.constant 0 : i32
    return %c0_i32, %c0_i32_0 : i32, i32
  }
  func.func @transform_7(%arg0: i32) -> (i32, i32) {
    %c0_i32 = arith.constant 0 : i32
    %c0_i32_0 = arith.constant 0 : i32
    %c0_i32_1 = arith.constant 0 : i32
    return %c0_i32, %c0_i32_0 : i32, i32
  }
  func.func @transform_8(%arg0: i32) -> (i32, i32) {
    %c0_i32 = arith.constant 0 : i32
    %c0_i32_0 = arith.constant 0 : i32
    %c0_i32_1 = arith.constant 0 : i32
    return %c0_i32, %c0_i32_0 : i32, i32
  }
  func.func @transform_9(%arg0: i32) -> (i32, i32) {
    %c0_i32 = arith.constant 0 : i32
    %c0_i32_0 = arith.constant 0 : i32
    %c0_i32_1 = arith.constant 0 : i32
    return %c0_i32, %c0_i32_0 : i32, i32
  }
  func.func @transform_10(%arg0: i32) -> (i32, i32) {
    %c0_i32 = arith.constant 0 : i32
    %c0_i32_0 = arith.constant 0 : i32
    %c0_i32_1 = arith.constant 0 : i32
    return %c0_i32, %c0_i32_0 : i32, i32
  }
  func.func @transform_11(%arg0: i32) -> (i32, i32) {
    %c0_i32 = arith.constant 0 : i32
    %c0_i32_0 = arith.constant 0 : i32
    %c0_i32_1 = arith.constant 0 : i32
    return %c0_i32, %c0_i32_0 : i32, i32
  }
  func.func @transform_12(%arg0: i32) -> (i32, i32) {
    %c0_i32 = arith.constant 0 : i32
    %c0_i32_0 = arith.constant 0 : i32
    %c0_i32_1 = arith.constant 0 : i32
    return %c0_i32, %c0_i32_0 : i32, i32
  }
  func.func @transform_13(%arg0: i32) -> (i32, i32) {
    %c0_i32 = arith.constant 0 : i32
    %c0_i32_0 = arith.constant 0 : i32
    %c0_i32_1 = arith.constant 0 : i32
    return %c0_i32, %c0_i32_0 : i32, i32
  }
  func.func @transform_14(%arg0: i32) -> (i32, i32) {
    %c0_i32 = arith.constant 0 : i32
    %c0_i32_0 = arith.constant 0 : i32
    %c0_i32_1 = arith.constant 0 : i32
    return %c0_i32, %c0_i32_0 : i32, i32
  }
  func.func @transform_15(%arg0: i32) -> (i32, i32, i32) {
    %c0_i32 = arith.constant 0 : i32
    %c0_i32_0 = arith.constant 0 : i32
    %c0_i32_1 = arith.constant 0 : i32
    return %arg0, %c0_i32, %c0_i32_0 : i32, i32, i32
  }
}

</mosaic_0001>

<llo_original>
// kernel: tpu_custom_call.1
$region0: #{tpu_custom_call.1}
  #allocation0 [shape = 'u32[]', space=smem, size = 0x4, offset = 0x4, fixed_abs, tag = 'smem constant byte address 0x4 - core index']
  #allocation1 [shape = 'u32[144,128]{1,0:T(1,128)}', space=vmem, size = 0x12000, scoped, tag = 'internal scratch']
  %s0 = inlined_call_operand.vmem [shape: f32[2,16,8], index: 0, kind: input, shape index: {}]
  %s1 = inlined_call_operand.vmem [shape: bf16[16,32], index: 1, kind: input, shape index: {}]
  %s2 = inlined_call_operand.vmem [shape: f32[1,32], index: 2, kind: input, shape index: {}]
  %s3 = inlined_call_operand.vmem [shape: bf16[32,16], index: 3, kind: input, shape index: {}]
  %s4 = inlined_call_operand.vmem [shape: f32[1,16], index: 4, kind: input, shape index: {}]
  %s5 = inlined_call_operand.vmem [shape: bf16[32,16], index: 5, kind: input, shape index: {}]
  %s6 = inlined_call_operand.vmem [shape: f32[1,16], index: 6, kind: input, shape index: {}]
  %s7 = inlined_call_operand.vmem [shape: bf16[32,16], index: 7, kind: input, shape index: {}]
  %s8 = inlined_call_operand.vmem [shape: f32[1,16], index: 8, kind: input, shape index: {}]
  %s9 = inlined_call_operand.vmem [shape: bf16[32,16], index: 9, kind: input, shape index: {}]
  %s10 = inlined_call_operand.vmem [shape: f32[1,16], index: 10, kind: input, shape index: {}]
  %s11 = inlined_call_operand.vmem [shape: bf16[32,16], index: 11, kind: input, shape index: {}]
  %s12 = inlined_call_operand.vmem [shape: f32[1,16], index: 12, kind: input, shape index: {}]
  %s13 = inlined_call_operand.vmem [shape: bf16[16,128], index: 13, kind: input, shape index: {}]
  %s14 = inlined_call_operand.vmem [shape: f32[1,128], index: 14, kind: input, shape index: {}]
  %s15 = inlined_call_operand.hbm [shape: f32[2,16,128], index: 15, kind: output, shape index: {}]
  %s16 = sld [smem:[#allocation0]]
  $region70: #{tpu_custom_call.1} parent=0
    _
  %s18 = ssub.s32 1, %s16
  %s19 = scalar_select 0, %s18, %s16
  $region1: #{tpu_custom_call.1} parent=0
    #allocation2 [shape = 'u8[16384]{0}', space=vmem, size = 0x4000, scoped, tag = 'output window, operand 0, single buffered']
    #allocation3 [shape = 's32[1]{0}', space=sflag, size = 0x4, scoped, tag = 'scoped memory for tpu_custom_call.1']
    %20 = vsyncpa [#allocation3], 0
    // Predicated region
    $region2: #{tpu_custom_call.1} parent=1 // pred_check
      _
    $region3: #{tpu_custom_call.1} parent=1 // pred_check_branch
      %22 = sbr.rel (0) target = $region5
    $region4: #{tpu_custom_call.1} parent=1 // pred_region
      _
    $region5: #{tpu_custom_call.1} parent=1 // pred_fallthru
      _
    // Predicated region
    $region6: #{tpu_custom_call.1} parent=1 // pred_check
      _
    $region7: #{tpu_custom_call.1} parent=1 // pred_check_branch
      %24 = sbr.rel (0) target = $region9
    $region8: #{tpu_custom_call.1} parent=1 // pred_region
      _
    $region9: #{tpu_custom_call.1} parent=1 // pred_fallthru
      _
    // Predicated region
    $region10: #{tpu_custom_call.1} parent=1 // pred_check
      _
    $region11: #{tpu_custom_call.1} parent=1 // pred_check_branch
      %26 = sbr.rel (0) target = $region13
    $region12: #{tpu_custom_call.1} parent=1 // pred_region
      _
    $region13: #{tpu_custom_call.1} parent=1 // pred_fallthru
      _
    // Predicated region
    $region14: #{tpu_custom_call.1} parent=1 // pred_check
      _
    $region15: #{tpu_custom_call.1} parent=1 // pred_check_branch
      %28 = sbr.rel (0) target = $region17
    $region16: #{tpu_custom_call.1} parent=1 // pred_region
      _
    $region17: #{tpu_custom_call.1} parent=1 // pred_fallthru
      _
    // Predicated region
    $region18: #{tpu_custom_call.1} parent=1 // pred_check
      _
    $region19: #{tpu_custom_call.1} parent=1 // pred_check_branch
      %30 = sbr.rel (0) target = $region21
    $region20: #{tpu_custom_call.1} parent=1 // pred_region
      _
    $region21: #{tpu_custom_call.1} parent=1 // pred_fallthru
      _
    // Predicated region
    $region22: #{tpu_custom_call.1} parent=1 // pred_check
      _
    $region23: #{tpu_custom_call.1} parent=1 // pred_check_branch
      %32 = sbr.rel (0) target = $region25
    $region24: #{tpu_custom_call.1} parent=1 // pred_region
      _
    $region25: #{tpu_custom_call.1} parent=1 // pred_fallthru
      _
    // Predicated region
    $region26: #{tpu_custom_call.1} parent=1 // pred_check
      _
    $region27: #{tpu_custom_call.1} parent=1 // pred_check_branch
      %34 = sbr.rel (0) target = $region29
    $region28: #{tpu_custom_call.1} parent=1 // pred_region
      _
    $region29: #{tpu_custom_call.1} parent=1 // pred_fallthru
      _
    // Predicated region
    $region30: #{tpu_custom_call.1} parent=1 // pred_check
      _
    $region31: #{tpu_custom_call.1} parent=1 // pred_check_branch
      %36 = sbr.rel (0) target = $region33
    $region32: #{tpu_custom_call.1} parent=1 // pred_region
      _
    $region33: #{tpu_custom_call.1} parent=1 // pred_fallthru
      _
    // Predicated region
    $region34: #{tpu_custom_call.1} parent=1 // pred_check
      _
    $region35: #{tpu_custom_call.1} parent=1 // pred_check_branch
      %38 = sbr.rel (0) target = $region37
    $region36: #{tpu_custom_call.1} parent=1 // pred_region
      _
    $region37: #{tpu_custom_call.1} parent=1 // pred_fallthru
      _
    // Predicated region
    $region38: #{tpu_custom_call.1} parent=1 // pred_check
      _
    $region39: #{tpu_custom_call.1} parent=1 // pred_check_branch
      %40 = sbr.rel (0) target = $region41
    $region40: #{tpu_custom_call.1} parent=1 // pred_region
      _
    $region41: #{tpu_custom_call.1} parent=1 // pred_fallthru
      _
    // Predicated region
    $region42: #{tpu_custom_call.1} parent=1 // pred_check
      _
    $region43: #{tpu_custom_call.1} parent=1 // pred_check_branch
      %42 = sbr.rel (0) target = $region45
    $region44: #{tpu_custom_call.1} parent=1 // pred_region
      _
    $region45: #{tpu_custom_call.1} parent=1 // pred_fallthru
      _
    // Predicated region
    $region46: #{tpu_custom_call.1} parent=1 // pred_check
      _
    $region47: #{tpu_custom_call.1} parent=1 // pred_check_branch
      %44 = sbr.rel (0) target = $region49
    $region48: #{tpu_custom_call.1} parent=1 // pred_region
      _
    $region49: #{tpu_custom_call.1} parent=1 // pred_fallthru
      _
    // Predicated region
    $region50: #{tpu_custom_call.1} parent=1 // pred_check
      _
    $region51: #{tpu_custom_call.1} parent=1 // pred_check_branch
      %46 = sbr.rel (0) target = $region53
    $region52: #{tpu_custom_call.1} parent=1 // pred_region
      _
    $region53: #{tpu_custom_call.1} parent=1 // pred_fallthru
      _
    // Predicated region
    $region54: #{tpu_custom_call.1} parent=1 // pred_check
      _
    $region55: #{tpu_custom_call.1} parent=1 // pred_check_branch
      %48 = sbr.rel (0) target = $region57
    $region56: #{tpu_custom_call.1} parent=1 // pred_region
      _
    $region57: #{tpu_custom_call.1} parent=1 // pred_fallthru
      _
    // Predicated region
    $region58: #{tpu_custom_call.1} parent=1 // pred_check
      _
    $region59: #{tpu_custom_call.1} parent=1 // pred_check_branch
      %50 = sbr.rel (0) target = $region61
    $region60: #{tpu_custom_call.1} parent=1 // pred_region
      _
    $region61: #{tpu_custom_call.1} parent=1 // pred_fallthru
      _
    %v52 = vld [vmem:[%s0] sm:$0xff]
    %v53 = vld [vmem:[%s0 + $0x8] sm:$0xff]
    %v54 = vld [vmem:[%s0 + $0x10] sm:$0xff]
    %v55 = vld [vmem:[%s0 + $0x18] sm:$0xff]
    %vm60 = vcmask 1040384
    %v61 = vrot.slane %v52, 7
    %v62 = vrot.slane %v53, 7
    %v63 = vsel %vm60, %v61, %v62
    %v64 = vrot.slane %v54, 7
    %v65 = vrot.slane %v55, 7
    %v66 = vsel %vm60, %v64, %v65
    %v71 = vsel %vm60, 0.0, %v61
    %v72 = vsel %vm60, 0.0, %v64
    %73 = vrot.lane.b32.xlu0 %v52, 8
    %v74 = vpop.permute.xlu0 %73
    %75 = vrot.lane.b32.xlu0 %v53, 8
    %v76 = vpop.permute.xlu0 %75
    %77 = vrot.lane.b32.xlu0 %v54, 8
    %v78 = vpop.permute.xlu0 %77
    %79 = vrot.lane.b32.xlu0 %v55, 8
    %v80 = vpop.permute.xlu0 %79
    %vm85 = vcmask 64512
    %v86 = vsel %vm85, %v71, %v74
    %v87 = vsel %vm85, %v63, %v76
    %v88 = vsel %vm85, %v72, %v78
    %v89 = vsel %vm85, %v66, %v80
    %v90 = vpack.c.bf16 %v87, %v86
    %v91 = vpack.c.bf16 %v89, %v88
    %v92 = vld [vmem:[%s1] sm:$0xf]
    %v93 = vld [vmem:[%s1 + $0x4] sm:$0xf]
    %v94 = vld [vmem:[%s2] sm:$0x1]
    %v96 = vlaneseq
    %v97 = vshrl.u32 %v96, 7
    %v98 = vsub.s32 0, %v97
    %v99 = vrot.slane %v94, %v98
    %v103 = vunpack.c.l.b16 %v92
    %v104 = vunpack.c.l.b16 %v93
    %v105 = vpack.c.b16 %v104, %v103
    %vm107 = vcmask 130048
    %v109 = vsel %vm107, %v90, 0
    %v112 = vsel %vm107, %v91, 0
    %114 = vmatprep.subr.bf16.mxu0 0
    %115 = vmatpush1.bf16.msra.mxu0 0
    %116 = vmatprep.subr.bf16.mxu0 0
    %117 = vmatpush1.bf16.msra.mxu0 0
    %118 = vmatprep.subr.bf16.mxu0 0
    %119 = vmatpush1.bf16.msra.mxu0 0
    %120 = vmatprep.subr.bf16.mxu0 0
    %121 = vmatpush1.bf16.msra.mxu0 0
    %122 = vmatprep.subr.bf16.mxu0 0
    %123 = vmatpush1.bf16.msra.mxu0 0
    %124 = vmatprep.subr.bf16.mxu0 0
    %125 = vmatpush1.bf16.msra.mxu0 0
    %126 = vmatprep.subr.bf16.mxu0 0
    %127 = vmatpush1.bf16.msra.mxu0 0
    %128 = vmatprep.subr.bf16.mxu0 0
    %129 = vmatpush1.bf16.msra.mxu0 %v105
    %130 = vmatprep.subr.bf16.mxu0 0
    %131 = vmatpush2.bf16.msra.mxu0 0
    %132 = vmatprep.subr.bf16.mxu0 0
    %133 = vmatpush2.bf16.msra.mxu0 0
    %134 = vmatprep.subr.bf16.mxu0 0
    %135 = vmatpush2.bf16.msra.mxu0 0
    %136 = vmatprep.subr.bf16.mxu0 0
    %137 = vmatpush2.bf16.msra.mxu0 0
    %138 = vmatprep.subr.bf16.mxu0 0
    %139 = vmatpush2.bf16.msra.mxu0 0
    %140 = vmatprep.subr.bf16.mxu0 0
    %141 = vmatpush2.bf16.msra.mxu0 0
    %142 = vmatprep.subr.bf16.mxu0 0
    %143 = vmatpush2.bf16.msra.mxu0 0
    %144 = vmatprep.subr.bf16.mxu0 0
    %145 = vmatpush2.bf16.msra.mxu0 0
    %146 = vmatprep.mubr.bf16.mxu0 0
    %147 = vmatmul.mubr.bf16.gmra.mxu0 %v109
    %v148 = vpop.f32.mrf.mxu0
    %v149 = vadd.f32 %v99, %v148
    %v150 = vpop.f32.mrf.mxu0
    %v151 = vpop.f32.mrf.mxu0
    %v152 = vadd.f32 %v99, %v151
    %v153 = vpop.f32.mrf.mxu0
    %154 = vmatprep.mubr.bf16.mxu0 0
    %155 = vmatmul.mubr.bf16.gmra.mxu0 %v112
    %v156 = vpop.f32.mrf.mxu0
    %v157 = vadd.f32 %v99, %v156
    %v158 = vpop.f32.mrf.mxu0
    %v159 = vpop.f32.mrf.mxu0
    %v160 = vadd.f32 %v99, %v159
    %v161 = vpop.f32.mrf.mxu0
    %162 = vdwg.mxu0
    %v163 = vmax.f32 %v149, 0.0
    %v164 = vmax.f32 %v152, 0.0
    %v165 = vmax.f32 %v157, 0.0
    %v166 = vmax.f32 %v160, 0.0
    %v171 = vrot.slane %v163, 7
    %v172 = vrot.slane %v164, 7
    %v173 = vsel %vm60, %v171, %v172
    %v174 = vrot.slane %v165, 7
    %v175 = vrot.slane %v166, 7
    %v176 = vsel %vm60, %v174, %v175
    %v181 = vsel %vm60, 0.0, %v171
    %v182 = vsel %vm60, 0.0, %v174
    %183 = vrot.lane.b32.xlu0 %v163, 16
    %v184 = vpop.permute.xlu0 %183
    %185 = vrot.lane.b32.xlu0 %v164, 16
    %v186 = vpop.permute.xlu0 %185
    %187 = vrot.lane.b32.xlu0 %v165, 16
    %v188 = vpop.permute.xlu0 %187
    %189 = vrot.lane.b32.xlu0 %v166, 16
    %v190 = vpop.permute.xlu0 %189
    %v195 = vsel %vm107, %v181, %v184
    %v196 = vsel %vm107, %v173, %v186
    %v197 = vsel %vm107, %v182, %v188
    %v198 = vsel %vm107, %v176, %v190
    %v199 = vpack.c.bf16 %v196, %v195
    %v200 = vpack.c.bf16 %v198, %v197
    %v201 = vld [vmem:[%s3] sm:$0xf]
    %v202 = vld [vmem:[%s3 + $0x4] sm:$0xf]
    %v203 = vld [vmem:[%s3 + $0x8] sm:$0xf]
    %v204 = vld [vmem:[%s3 + $0xc] sm:$0xf]
    %v205 = vld [vmem:[%s4] sm:$0x1]
    %v207 = vlaneseq
    %v208 = vshrl.u32 %v207, 7
    %v209 = vsub.s32 0, %v208
    %v210 = vrot.slane %v205, %v209
    %v216 = vunpack.c.l.b16 %v201
    %v217 = vunpack.c.l.b16 %v202
    %v218 = vunpack.c.l.b16 %v203
    %v219 = vunpack.c.l.b16 %v204
    %v220 = vpack.c.b16 %v217, %v216
    %v221 = vpack.c.b16 %v219, %v218
    %vm224 = vcmask 261120
    %v226 = vsel %vm224, %v199, 0
    %v229 = vsel %vm224, %v200, 0
    %231 = vmatprep.subr.bf16.mxu0 0
    %232 = vmatpush1.bf16.msra.mxu0 0
    %233 = vmatprep.subr.bf16.mxu0 0
    %234 = vmatpush1.bf16.msra.mxu0 0
    %235 = vmatprep.subr.bf16.mxu0 0
    %236 = vmatpush1.bf16.msra.mxu0 0
    %237 = vmatprep.subr.bf16.mxu0 0
    %238 = vmatpush1.bf16.msra.mxu0 0
    %239 = vmatprep.subr.bf16.mxu0 0
    %240 = vmatpush1.bf16.msra.mxu0 0
    %241 = vmatprep.subr.bf16.mxu0 0
    %242 = vmatpush1.bf16.msra.mxu0 0
    %243 = vmatprep.subr.bf16.mxu0 0
    %244 = vmatpush1.bf16.msra.mxu0 %v221
    %245 = vmatprep.subr.bf16.mxu0 0
    %246 = vmatpush1.bf16.msra.mxu0 %v220
    %247 = vmatprep.subr.bf16.mxu0 0
    %248 = vmatpush2.bf16.msra.mxu0 0
    %249 = vmatprep.subr.bf16.mxu0 0
    %250 = vmatpush2.bf16.msra.mxu0 0
    %251 = vmatprep.subr.bf16.mxu0 0
    %252 = vmatpush2.bf16.msra.mxu0 0
    %253 = vmatprep.subr.bf16.mxu0 0
    %254 = vmatpush2.bf16.msra.mxu0 0
    %255 = vmatprep.subr.bf16.mxu0 0
    %256 = vmatpush2.bf16.msra.mxu0 0
    %257 = vmatprep.subr.bf16.mxu0 0
    %258 = vmatpush2.bf16.msra.mxu0 0
    %259 = vmatprep.subr.bf16.mxu0 0
    %260 = vmatpush2.bf16.msra.mxu0 0
    %261 = vmatprep.subr.bf16.mxu0 0
    %262 = vmatpush2.bf16.msra.mxu0 0
    %263 = vmatprep.mubr.bf16.mxu0 0
    %264 = vmatmul.mubr.bf16.gmra.mxu0 %v226
    %v265 = vpop.f32.mrf.mxu0
    %v266 = vadd.f32 %v210, %v265
    %v267 = vpop.f32.mrf.mxu0
    %v268 = vpop.f32.mrf.mxu0
    %v269 = vadd.f32 %v210, %v268
    %v270 = vpop.f32.mrf.mxu0
    %271 = vmatprep.mubr.bf16.mxu0 0
    %272 = vmatmul.mubr.bf16.gmra.mxu0 %v229
    %v273 = vpop.f32.mrf.mxu0
    %v274 = vadd.f32 %v210, %v273
    %v275 = vpop.f32.mrf.mxu0
    %v276 = vpop.f32.mrf.mxu0
    %v277 = vadd.f32 %v210, %v276
    %v278 = vpop.f32.mrf.mxu0
    %279 = vdwg.mxu0
    %v280 = vmax.f32 %v266, 0.0
    %v281 = vmax.f32 %v269, 0.0
    %v282 = vmax.f32 %v274, 0.0
    %v283 = vmax.f32 %v277, 0.0
    %288 = vrot.lane.b32.xlu0 %v149, 112
    %v289 = vpop.permute.xlu0 %288
    %290 = vrot.lane.b32.xlu0 %v152, 112
    %v291 = vpop.permute.xlu0 %290
    %292 = vrot.lane.b32.xlu0 %v157, 112
    %v293 = vpop.permute.xlu0 %292
    %294 = vrot.lane.b32.xlu0 %v160, 112
    %v295 = vpop.permute.xlu0 %294
    %v300 = vadd.f32 %v280, %v289
    %v301 = vadd.f32 %v281, %v291
    %v302 = vadd.f32 %v282, %v293
    %v303 = vadd.f32 %v283, %v295
    %v304 = vmax.f32 %v300, 0.0
    %v305 = vmax.f32 %v301, 0.0
    %v306 = vmax.f32 %v302, 0.0
    %v307 = vmax.f32 %v303, 0.0
    %vm312 = vcmask 1041408
    %v313 = vrot.slane %v304, 6
    %v314 = vrot.slane %v305, 6
    %v315 = vsel %vm312, %v313, %v314
    %v316 = vrot.slane %v306, 6
    %v317 = vrot.slane %v307, 6
    %v318 = vsel %vm312, %v316, %v317
    %v323 = vsel %vm312, 0.0, %v313
    %v324 = vsel %vm312, 0.0, %v316
    %325 = vrot.lane.b32.xlu0 %v304, 16
    %v326 = vpop.permute.xlu0 %325
    %327 = vrot.lane.b32.xlu0 %v305, 16
    %v328 = vpop.permute.xlu0 %327
    %329 = vrot.lane.b32.xlu0 %v306, 16
    %v330 = vpop.permute.xlu0 %329
    %331 = vrot.lane.b32.xlu0 %v307, 16
    %v332 = vpop.permute.xlu0 %331
    %v337 = vsel %vm107, %v323, %v326
    %v338 = vsel %vm107, %v315, %v328
    %v339 = vsel %vm107, %v324, %v330
    %v340 = vsel %vm107, %v318, %v332
    %v341 = vpack.c.bf16 %v338, %v337
    %v342 = vpack.c.bf16 %v340, %v339
    %v343 = vld [vmem:[%s5] sm:$0xf]
    %v344 = vld [vmem:[%s5 + $0x4] sm:$0xf]
    %v345 = vld [vmem:[%s5 + $0x8] sm:$0xf]
    %v346 = vld [vmem:[%s5 + $0xc] sm:$0xf]
    %v347 = vld [vmem:[%s6] sm:$0x1]
    %v349 = vlaneseq
    %v350 = vshrl.u32 %v349, 7
    %v351 = vsub.s32 0, %v350
    %v352 = vrot.slane %v347, %v351
    %v358 = vunpack.c.l.b16 %v343
    %v359 = vunpack.c.l.b16 %v344
    %v360 = vunpack.c.l.b16 %v345
    %v361 = vunpack.c.l.b16 %v346
    %v362 = vpack.c.b16 %v359, %v358
    %v363 = vpack.c.b16 %v361, %v360
    %v367 = vsel %vm224, %v341, 0
    %v370 = vsel %vm224, %v342, 0
    %372 = vmatprep.subr.bf16.mxu0 0
    %373 = vmatpush1.bf16.msra.mxu0 0
    %374 = vmatprep.subr.bf16.mxu0 0
    %375 = vmatpush1.bf16.msra.mxu0 0
    %376 = vmatprep.subr.bf16.mxu0 0
    %377 = vmatpush1.bf16.msra.mxu0 0
    %378 = vmatprep.subr.bf16.mxu0 0
    %379 = vmatpush1.bf16.msra.mxu0 0
    %380 = vmatprep.subr.bf16.mxu0 0
    %381 = vmatpush1.bf16.msra.mxu0 0
    %382 = vmatprep.subr.bf16.mxu0 0
    %383 = vmatpush1.bf16.msra.mxu0 0
    %384 = vmatprep.subr.bf16.mxu0 0
    %385 = vmatpush1.bf16.msra.mxu0 %v363
    %386 = vmatprep.subr.bf16.mxu0 0
    %387 = vmatpush1.bf16.msra.mxu0 %v362
    %388 = vmatprep.subr.bf16.mxu0 0
    %389 = vmatpush2.bf16.msra.mxu0 0
    %390 = vmatprep.subr.bf16.mxu0 0
    %391 = vmatpush2.bf16.msra.mxu0 0
    %392 = vmatprep.subr.bf16.mxu0 0
    %393 = vmatpush2.bf16.msra.mxu0 0
    %394 = vmatprep.subr.bf16.mxu0 0
    %395 = vmatpush2.bf16.msra.mxu0 0
    %396 = vmatprep.subr.bf16.mxu0 0
    %397 = vmatpush2.bf16.msra.mxu0 0
    %398 = vmatprep.subr.bf16.mxu0 0
    %399 = vmatpush2.bf16.msra.mxu0 0
    %400 = vmatprep.subr.bf16.mxu0 0
    %401 = vmatpush2.bf16.msra.mxu0 0
    %402 = vmatprep.subr.bf16.mxu0 0
    %403 = vmatpush2.bf16.msra.mxu0 0
    %404 = vmatprep.mubr.bf16.mxu0 0
    %405 = vmatmul.mubr.bf16.gmra.mxu0 %v367
    %v406 = vpop.f32.mrf.mxu0
    %v407 = vadd.f32 %v352, %v406
    %v408 = vpop.f32.mrf.mxu0
    %v409 = vpop.f32.mrf.mxu0
    %v410 = vadd.f32 %v352, %v409
    %v411 = vpop.f32.mrf.mxu0
    %412 = vmatprep.mubr.bf16.mxu0 0
    %413 = vmatmul.mubr.bf16.gmra.mxu0 %v370
    %v414 = vpop.f32.mrf.mxu0
    %v415 = vadd.f32 %v352, %v414
    %v416 = vpop.f32.mrf.mxu0
    %v417 = vpop.f32.mrf.mxu0
    %v418 = vadd.f32 %v352, %v417
    %v419 = vpop.f32.mrf.mxu0
    %420 = vdwg.mxu0
    %v421 = vmax.f32 %v407, 0.0
    %v422 = vmax.f32 %v410, 0.0
    %v423 = vmax.f32 %v415, 0.0
    %v424 = vmax.f32 %v418, 0.0
    %v429 = vrot.slane %v421, 6
    %v430 = vrot.slane %v422, 6
    %v431 = vsel %vm312, %v429, %v430
    %v432 = vrot.slane %v423, 6
    %v433 = vrot.slane %v424, 6
    %v434 = vsel %vm312, %v432, %v433
    %v439 = vsel %vm312, 0.0, %v429
    %v440 = vsel %vm312, 0.0, %v432
    %441 = vrot.lane.b32.xlu0 %v421, 16
    %v442 = vpop.permute.xlu0 %441
    %443 = vrot.lane.b32.xlu0 %v422, 16
    %v444 = vpop.permute.xlu0 %443
    %445 = vrot.lane.b32.xlu0 %v423, 16
    %v446 = vpop.permute.xlu0 %445
    %447 = vrot.lane.b32.xlu0 %v424, 16
    %v448 = vpop.permute.xlu0 %447
    %v453 = vsel %vm107, %v439, %v442
    %v454 = vsel %vm107, %v431, %v444
    %v455 = vsel %vm107, %v440, %v446
    %v456 = vsel %vm107, %v434, %v448
    %v457 = vpack.c.bf16 %v454, %v453
    %v458 = vpack.c.bf16 %v456, %v455
    %v459 = vld [vmem:[%s7] sm:$0xf]
    %v460 = vld [vmem:[%s7 + $0x4] sm:$0xf]
    %v461 = vld [vmem:[%s7 + $0x8] sm:$0xf]
    %v462 = vld [vmem:[%s7 + $0xc] sm:$0xf]
    %v463 = vld [vmem:[%s8] sm:$0x1]
    %v465 = vlaneseq
    %v466 = vshrl.u32 %v465, 7
    %v467 = vsub.s32 0, %v466
    %v468 = vrot.slane %v463, %v467
    %v474 = vunpack.c.l.b16 %v459
    %v475 = vunpack.c.l.b16 %v460
    %v476 = vunpack.c.l.b16 %v461
    %v477 = vunpack.c.l.b16 %v462
    %v478 = vpack.c.b16 %v475, %v474
    %v479 = vpack.c.b16 %v477, %v476
    %v483 = vsel %vm224, %v457, 0
    %v486 = vsel %vm224, %v458, 0
    %488 = vmatprep.subr.bf16.mxu0 0
    %489 = vmatpush1.bf16.msra.mxu0 0
    %490 = vmatprep.subr.bf16.mxu0 0
    %491 = vmatpush1.bf16.msra.mxu0 0
    %492 = vmatprep.subr.bf16.mxu0 0
    %493 = vmatpush1.bf16.msra.mxu0 0
    %494 = vmatprep.subr.bf16.mxu0 0
    %495 = vmatpush1.bf16.msra.mxu0 0
    %496 = vmatprep.subr.bf16.mxu0 0
    %497 = vmatpush1.bf16.msra.mxu0 0
    %498 = vmatprep.subr.bf16.mxu0 0
    %499 = vmatpush1.bf16.msra.mxu0 0
    %500 = vmatprep.subr.bf16.mxu0 0
    %501 = vmatpush1.bf16.msra.mxu0 %v479
    %502 = vmatprep.subr.bf16.mxu0 0
    %503 = vmatpush1.bf16.msra.mxu0 %v478
    %504 = vmatprep.subr.bf16.mxu0 0
    %505 = vmatpush2.bf16.msra.mxu0 0
    %506 = vmatprep.subr.bf16.mxu0 0
    %507 = vmatpush2.bf16.msra.mxu0 0
    %508 = vmatprep.subr.bf16.mxu0 0
    %509 = vmatpush2.bf16.msra.mxu0 0
    %510 = vmatprep.subr.bf16.mxu0 0
    %511 = vmatpush2.bf16.msra.mxu0 0
    %512 = vmatprep.subr.bf16.mxu0 0
    %513 = vmatpush2.bf16.msra.mxu0 0
    %514 = vmatprep.subr.bf16.mxu0 0
    %515 = vmatpush2.bf16.msra.mxu0 0
    %516 = vmatprep.subr.bf16.mxu0 0
    %517 = vmatpush2.bf16.msra.mxu0 0
    %518 = vmatprep.subr.bf16.mxu0 0
    %519 = vmatpush2.bf16.msra.mxu0 0
    %520 = vmatprep.mubr.bf16.mxu0 0
    %521 = vmatmul.mubr.bf16.gmra.mxu0 %v483
    %v522 = vpop.f32.mrf.mxu0
    %v523 = vadd.f32 %v468, %v522
    %v524 = vpop.f32.mrf.mxu0
    %v525 = vpop.f32.mrf.mxu0
    %v526 = vadd.f32 %v468, %v525
    %v527 = vpop.f32.mrf.mxu0
    %528 = vmatprep.mubr.bf16.mxu0 0
    %529 = vmatmul.mubr.bf16.gmra.mxu0 %v486
    %v530 = vpop.f32.mrf.mxu0
    %v531 = vadd.f32 %v468, %v530
    %v532 = vpop.f32.mrf.mxu0
    %v533 = vpop.f32.mrf.mxu0
    %v534 = vadd.f32 %v468, %v533
    %v535 = vpop.f32.mrf.mxu0
    %536 = vdwg.mxu0
    %v537 = vmax.f32 %v523, 0.0
    %v538 = vmax.f32 %v526, 0.0
    %v539 = vmax.f32 %v531, 0.0
    %v540 = vmax.f32 %v534, 0.0
    %v541 = vadd.f32 %v537, %v304
    %v542 = vadd.f32 %v538, %v305
    %v543 = vadd.f32 %v539, %v306
    %v544 = vadd.f32 %v540, %v307
    %v545 = vmax.f32 %v541, 0.0
    %v546 = vmax.f32 %v542, 0.0
    %v547 = vmax.f32 %v543, 0.0
    %v548 = vmax.f32 %v544, 0.0
    %vm553 = vcmask 1043456
    %v554 = vrot.slane %v545, 4
    %v555 = vrot.slane %v546, 4
    %v556 = vsel %vm553, %v554, %v555
    %v557 = vrot.slane %v547, 4
    %v558 = vrot.slane %v548, 4
    %v559 = vsel %vm553, %v557, %v558
    %v564 = vsel %vm553, 0.0, %v554
    %v565 = vsel %vm553, 0.0, %v557
    %566 = vrot.lane.b32.xlu0 %v545, 16
    %v567 = vpop.permute.xlu0 %566
    %568 = vrot.lane.b32.xlu0 %v546, 16
    %v569 = vpop.permute.xlu0 %568
    %570 = vrot.lane.b32.xlu0 %v547, 16
    %v571 = vpop.permute.xlu0 %570
    %572 = vrot.lane.b32.xlu0 %v548, 16
    %v573 = vpop.permute.xlu0 %572
    %v578 = vsel %vm107, %v564, %v567
    %v579 = vsel %vm107, %v556, %v569
    %v580 = vsel %vm107, %v565, %v571
    %v581 = vsel %vm107, %v559, %v573
    %v582 = vpack.c.bf16 %v579, %v578
    %v583 = vpack.c.bf16 %v581, %v580
    %v584 = vld [vmem:[%s9] sm:$0xf]
    %v585 = vld [vmem:[%s9 + $0x4] sm:$0xf]
    %v586 = vld [vmem:[%s9 + $0x8] sm:$0xf]
    %v587 = vld [vmem:[%s9 + $0xc] sm:$0xf]
    %v588 = vld [vmem:[%s10] sm:$0x1]
    %v590 = vlaneseq
    %v591 = vshrl.u32 %v590, 7
    %v592 = vsub.s32 0, %v591
    %v593 = vrot.slane %v588, %v592
    %v599 = vunpack.c.l.b16 %v584
    %v600 = vunpack.c.l.b16 %v585
    %v601 = vunpack.c.l.b16 %v586
    %v602 = vunpack.c.l.b16 %v587
    %v603 = vpack.c.b16 %v600, %v599
    %v604 = vpack.c.b16 %v602, %v601
    %v608 = vsel %vm224, %v582, 0
    %v611 = vsel %vm224, %v583, 0
    %613 = vmatprep.subr.bf16.mxu0 0
    %614 = vmatpush1.bf16.msra.mxu0 0
    %615 = vmatprep.subr.bf16.mxu0 0
    %616 = vmatpush1.bf16.msra.mxu0 0
    %617 = vmatprep.subr.bf16.mxu0 0
    %618 = vmatpush1.bf16.msra.mxu0 0
    %619 = vmatprep.subr.bf16.mxu0 0
    %620 = vmatpush1.bf16.msra.mxu0 0
    %621 = vmatprep.subr.bf16.mxu0 0
    %622 = vmatpush1.bf16.msra.mxu0 0
    %623 = vmatprep.subr.bf16.mxu0 0
    %624 = vmatpush1.bf16.msra.mxu0 0
    %625 = vmatprep.subr.bf16.mxu0 0
    %626 = vmatpush1.bf16.msra.mxu0 %v604
    %627 = vmatprep.subr.bf16.mxu0 0
    %628 = vmatpush1.bf16.msra.mxu0 %v603
    %629 = vmatprep.subr.bf16.mxu0 0
    %630 = vmatpush2.bf16.msra.mxu0 0
    %631 = vmatprep.subr.bf16.mxu0 0
    %632 = vmatpush2.bf16.msra.mxu0 0
    %633 = vmatprep.subr.bf16.mxu0 0
    %634 = vmatpush2.bf16.msra.mxu0 0
    %635 = vmatprep.subr.bf16.mxu0 0
    %636 = vmatpush2.bf16.msra.mxu0 0
    %637 = vmatprep.subr.bf16.mxu0 0
    %638 = vmatpush2.bf16.msra.mxu0 0
    %639 = vmatprep.subr.bf16.mxu0 0
    %640 = vmatpush2.bf16.msra.mxu0 0
    %641 = vmatprep.subr.bf16.mxu0 0
    %642 = vmatpush2.bf16.msra.mxu0 0
    %643 = vmatprep.subr.bf16.mxu0 0
    %644 = vmatpush2.bf16.msra.mxu0 0
    %645 = vmatprep.mubr.bf16.mxu0 0
    %646 = vmatmul.mubr.bf16.gmra.mxu0 %v608
    %v647 = vpop.f32.mrf.mxu0
    %v648 = vadd.f32 %v593, %v647
    %v649 = vpop.f32.mrf.mxu0
    %v650 = vpop.f32.mrf.mxu0
    %v651 = vadd.f32 %v593, %v650
    %v652 = vpop.f32.mrf.mxu0
    %653 = vmatprep.mubr.bf16.mxu0 0
    %654 = vmatmul.mubr.bf16.gmra.mxu0 %v611
    %v655 = vpop.f32.mrf.mxu0
    %v656 = vadd.f32 %v593, %v655
    %v657 = vpop.f32.mrf.mxu0
    %v658 = vpop.f32.mrf.mxu0
    %v659 = vadd.f32 %v593, %v658
    %v660 = vpop.f32.mrf.mxu0
    %661 = vdwg.mxu0
    %v662 = vmax.f32 %v648, 0.0
    %v663 = vmax.f32 %v651, 0.0
    %v664 = vmax.f32 %v656, 0.0
    %v665 = vmax.f32 %v659, 0.0
    %v670 = vrot.slane %v662, 4
    %v671 = vrot.slane %v663, 4
    %v672 = vsel %vm553, %v670, %v671
    %v673 = vrot.slane %v664, 4
    %v674 = vrot.slane %v665, 4
    %v675 = vsel %vm553, %v673, %v674
    %v680 = vsel %vm553, 0.0, %v670
    %v681 = vsel %vm553, 0.0, %v673
    %682 = vrot.lane.b32.xlu0 %v662, 16
    %v683 = vpop.permute.xlu0 %682
    %684 = vrot.lane.b32.xlu0 %v663, 16
    %v685 = vpop.permute.xlu0 %684
    %686 = vrot.lane.b32.xlu0 %v664, 16
    %v687 = vpop.permute.xlu0 %686
    %688 = vrot.lane.b32.xlu0 %v665, 16
    %v689 = vpop.permute.xlu0 %688
    %v694 = vsel %vm107, %v680, %v683
    %v695 = vsel %vm107, %v672, %v685
    %v696 = vsel %vm107, %v681, %v687
    %v697 = vsel %vm107, %v675, %v689
    %v698 = vpack.c.bf16 %v695, %v694
    %v699 = vpack.c.bf16 %v697, %v696
    %v700 = vld [vmem:[%s11] sm:$0xf]
    %v701 = vld [vmem:[%s11 + $0x4] sm:$0xf]
    %v702 = vld [vmem:[%s11 + $0x8] sm:$0xf]
    %v703 = vld [vmem:[%s11 + $0xc] sm:$0xf]
    %v704 = vld [vmem:[%s12] sm:$0x1]
    %v706 = vlaneseq
    %v707 = vshrl.u32 %v706, 7
    %v708 = vsub.s32 0, %v707
    %v709 = vrot.slane %v704, %v708
    %v715 = vunpack.c.l.b16 %v700
    %v716 = vunpack.c.l.b16 %v701
    %v717 = vunpack.c.l.b16 %v702
    %v718 = vunpack.c.l.b16 %v703
    %v719 = vpack.c.b16 %v716, %v715
    %v720 = vpack.c.b16 %v718, %v717
    %v724 = vsel %vm224, %v698, 0
    %v727 = vsel %vm224, %v699, 0
    %729 = vmatprep.subr.bf16.mxu0 0
    %730 = vmatpush1.bf16.msra.mxu0 0
    %731 = vmatprep.subr.bf16.mxu0 0
    %732 = vmatpush1.bf16.msra.mxu0 0
    %733 = vmatprep.subr.bf16.mxu0 0
    %734 = vmatpush1.bf16.msra.mxu0 0
    %735 = vmatprep.subr.bf16.mxu0 0
    %736 = vmatpush1.bf16.msra.mxu0 0
    %737 = vmatprep.subr.bf16.mxu0 0
    %738 = vmatpush1.bf16.msra.mxu0 0
    %739 = vmatprep.subr.bf16.mxu0 0
    %740 = vmatpush1.bf16.msra.mxu0 0
    %741 = vmatprep.subr.bf16.mxu0 0
    %742 = vmatpush1.bf16.msra.mxu0 %v720
    %743 = vmatprep.subr.bf16.mxu0 0
    %744 = vmatpush1.bf16.msra.mxu0 %v719
    %745 = vmatprep.subr.bf16.mxu0 0
    %746 = vmatpush2.bf16.msra.mxu0 0
    %747 = vmatprep.subr.bf16.mxu0 0
    %748 = vmatpush2.bf16.msra.mxu0 0
    %749 = vmatprep.subr.bf16.mxu0 0
    %750 = vmatpush2.bf16.msra.mxu0 0
    %751 = vmatprep.subr.bf16.mxu0 0
    %752 = vmatpush2.bf16.msra.mxu0 0
    %753 = vmatprep.subr.bf16.mxu0 0
    %754 = vmatpush2.bf16.msra.mxu0 0
    %755 = vmatprep.subr.bf16.mxu0 0
    %756 = vmatpush2.bf16.msra.mxu0 0
    %757 = vmatprep.subr.bf16.mxu0 0
    %758 = vmatpush2.bf16.msra.mxu0 0
    %759 = vmatprep.subr.bf16.mxu0 0
    %760 = vmatpush2.bf16.msra.mxu0 0
    %761 = vmatprep.mubr.bf16.mxu0 0
    %762 = vmatmul.mubr.bf16.gmra.mxu0 %v724
    %v763 = vpop.f32.mrf.mxu0
    %v764 = vadd.f32 %v709, %v763
    %v765 = vpop.f32.mrf.mxu0
    %v766 = vpop.f32.mrf.mxu0
    %v767 = vadd.f32 %v709, %v766
    %v768 = vpop.f32.mrf.mxu0
    %769 = vmatprep.mubr.bf16.mxu0 0
    %770 = vmatmul.mubr.bf16.gmra.mxu0 %v727
    %v771 = vpop.f32.mrf.mxu0
    %v772 = vadd.f32 %v709, %v771
    %v773 = vpop.f32.mrf.mxu0
    %v774 = vpop.f32.mrf.mxu0
    %v775 = vadd.f32 %v709, %v774
    %v776 = vpop.f32.mrf.mxu0
    %777 = vdwg.mxu0
    %v778 = vmax.f32 %v764, 0.0
    %v779 = vmax.f32 %v767, 0.0
    %v780 = vmax.f32 %v772, 0.0
    %v781 = vmax.f32 %v775, 0.0
    %v782 = vadd.f32 %v778, %v545
    %v783 = vadd.f32 %v779, %v546
    %v784 = vadd.f32 %v780, %v547
    %v785 = vadd.f32 %v781, %v548
    %v786 = vmax.f32 %v782, 0.0
    %v787 = vmax.f32 %v783, 0.0
    %v788 = vmax.f32 %v784, 0.0
    %v789 = vmax.f32 %v785, 0.0
    %v790 = vpack.c.bf16 %v787, %v786
    %v791 = vpack.c.bf16 %v789, %v788
    %v792 = vld [vmem:[%s13] sm:$0xf]
    %v793 = vld [vmem:[%s13 + $0x4] sm:$0xf]
    %v794 = vld [vmem:[%s14] sm:$0x1]
    %v796 = vlaneseq
    %v797 = vshrl.u32 %v796, 7
    %v798 = vsub.s32 0, %v797
    %v799 = vrot.slane %v794, %v798
    %v803 = vunpack.c.l.b16 %v792
    %v804 = vunpack.c.l.b16 %v793
    %v805 = vpack.c.b16 %v804, %v803
    %v808 = vsel %vm107, %v790, 0
    %v811 = vsel %vm107, %v791, 0
    %813 = vmatprep.subr.bf16.mxu0 0
    %814 = vmatpush1.bf16.msra.mxu0 0
    %815 = vmatprep.subr.bf16.mxu0 0
    %816 = vmatpush1.bf16.msra.mxu0 0
    %817 = vmatprep.subr.bf16.mxu0 0
    %818 = vmatpush1.bf16.msra.mxu0 0
    %819 = vmatprep.subr.bf16.mxu0 0
    %820 = vmatpush1.bf16.msra.mxu0 0
    %821 = vmatprep.subr.bf16.mxu0 0
    %822 = vmatpush1.bf16.msra.mxu0 0
    %823 = vmatprep.subr.bf16.mxu0 0
    %824 = vmatpush1.bf16.msra.mxu0 0
    %825 = vmatprep.subr.bf16.mxu0 0
    %826 = vmatpush1.bf16.msra.mxu0 0
    %827 = vmatprep.subr.bf16.mxu0 0
    %828 = vmatpush1.bf16.msra.mxu0 %v805
    %829 = vmatprep.subr.bf16.mxu0 0
    %830 = vmatpush2.bf16.msra.mxu0 0
    %831 = vmatprep.subr.bf16.mxu0 0
    %832 = vmatpush2.bf16.msra.mxu0 0
    %833 = vmatprep.subr.bf16.mxu0 0
    %834 = vmatpush2.bf16.msra.mxu0 0
    %835 = vmatprep.subr.bf16.mxu0 0
    %836 = vmatpush2.bf16.msra.mxu0 0
    %837 = vmatprep.subr.bf16.mxu0 0
    %838 = vmatpush2.bf16.msra.mxu0 0
    %839 = vmatprep.subr.bf16.mxu0 0
    %840 = vmatpush2.bf16.msra.mxu0 0
    %841 = vmatprep.subr.bf16.mxu0 0
    %842 = vmatpush2.bf16.msra.mxu0 0
    %843 = vmatprep.subr.bf16.mxu0 0
    %844 = vmatpush2.bf16.msra.mxu0 0
    %845 = vmatprep.mubr.bf16.mxu0 0
    %846 = vmatmul.mubr.bf16.gmra.mxu0 %v808
    %v847 = vpop.f32.mrf.mxu0
    %v848 = vadd.f32 %v799, %v847
    %v849 = vpop.f32.mrf.mxu0
    %v850 = vpop.f32.mrf.mxu0
    %v851 = vadd.f32 %v799, %v850
    %v852 = vpop.f32.mrf.mxu0
    %853 = vmatprep.mubr.bf16.mxu0 0
    %854 = vmatmul.mubr.bf16.gmra.mxu0 %v811
    %v855 = vpop.f32.mrf.mxu0
    %v856 = vadd.f32 %v799, %v855
    %v857 = vpop.f32.mrf.mxu0
    %v858 = vpop.f32.mrf.mxu0
    %v859 = vadd.f32 %v799, %v858
    %v860 = vpop.f32.mrf.mxu0
    %861 = vdwg.mxu0
    %862 = vst [vmem:[#allocation2] sm:$0xff] %v848
    %863 = vst [vmem:[#allocation2 + $0x8] sm:$0xff] %v851
    %864 = vst [vmem:[#allocation2 + $0x10] sm:$0xff] %v856
    %865 = vst [vmem:[#allocation2 + $0x18] sm:$0xff] %v859
    // Predicated region
    $region62: #{tpu_custom_call.1} parent=1 // pred_check
      _
    $region63: #{tpu_custom_call.1} parent=1 // pred_check_branch
      %867 = sbr.rel (0) target = $region65
    $region64: #{tpu_custom_call.1} parent=1 // pred_region
      %s869 = ssub.s32 512, 512
      %870 = vsyncadd [#allocation3], %s869
      %s871 = sshll.u32 [#allocation2], 4
      %s872 = int_to_ptr.vmem [resolvable:$true] %s871
      %877 = dma.vmem_to_hbm [thread:$0]  %s872, 512, %s15, [#allocation3], 128, 128, 8
    $region65: #{tpu_custom_call.1} parent=1 // pred_fallthru
      _
    // Predicated region
    $region66: #{tpu_custom_call.1} parent=1 // pred_check
      _
    $region67: #{tpu_custom_call.1} parent=1 // pred_check_branch
      %879 = sbr.rel (0) target = $region69
    $region68: #{tpu_custom_call.1} parent=1 // pred_region
      %880 = dma.done [#allocation3], 512
    $region69: #{tpu_custom_call.1} parent=1 // pred_fallthru
      _
    %881 = vsyncpa [#allocation3], 1

</llo_original>
